<compile_context>
chip_gen: v6e
topology: v6e:2x2x1
jax: 0.10.0
libtpu: 0.0.40
codegen_flags: <defaults>
</compile_context>

<pallas_src>
import functools

import jax
import jax.numpy as jnp
from jax.experimental import pallas as pl
from jax.experimental.pallas import tpu as pltpu

BN_EPS = 1e-5
LANE = 128
TB_MAX = 1024                       # batch tile rows; 2048 ok on v6e/v7x with
                                    # a higher vmem_limit_bytes.
VMEM_LIMIT_BYTES = 32 * 1024 * 1024  # safe on v5e/v6e (128 MiB) and v7x (64 MiB)


def _round_up(n, m):
    return ((n + m - 1) // m) * m


def _pad2d(w, rows, cols):
    r, c = w.shape
    return jnp.pad(w, ((0, rows - r), (0, cols - c)))


# --------------------------------------------------------------------------
# Kernel: fused MLP forward for one batch tile.
# refs layout: [x, w_0..w_{nb-1}, w_cls, out_slab]
# --------------------------------------------------------------------------
def _mlp_fused_kernel(x_ref, *refs, num_blocks, col_offsets, col_widths):
    w_refs = refs[:num_blocks + 1]          # feature weights + classifier
    out_ref = refs[num_blocks + 1]          # single lane-dense bf16 slab

    h = x_ref[...].astype(jnp.bfloat16)     # in-kernel f32 -> bf16 cast (VPU)
    for i in range(num_blocks):
        y = jnp.dot(h, w_refs[i][...],
                    preferred_element_type=jnp.float32)   # MXU, f32 accum
        y = jnp.maximum(y, 0.0)                           # ReLU in f32 (v5e-safe)
        h = y.astype(jnp.bfloat16)                        # value reused by next dot
        out_ref[:, col_offsets[i]:col_offsets[i] + col_widths[i]] = h

    logits = jnp.dot(h, w_refs[num_blocks][...],
                     preferred_element_type=jnp.float32)
    j = num_blocks
    out_ref[:, col_offsets[j]:col_offsets[j] + col_widths[j]] = (
        logits.astype(jnp.bfloat16))


# --------------------------------------------------------------------------
# Parameter construction (mirrors the module __init__ + _initialize_weights).
# --------------------------------------------------------------------------
def build_params(key, num_classes=2, input_size=256, hidden_size=128,
                 hidden_layers=2):
    # Feature blocks: (din, dout, has_bn)
    dims = [(input_size, hidden_size, True)]
    for _ in range(hidden_layers - 1):
        dims.append((hidden_size, hidden_size, True))
    dims.append((hidden_size, 256, True))
    dims.append((256, 128, True))
    dims.append((128, 64, False))                 # fc4: Linear -> ReLU -> Dropout
    dims_all = dims + [(64, num_classes, False)]  # classifier (no ReLU)

    bn_fold = jnp.float32(1.0 / (1.0 + BN_EPS) ** 0.5)   # eval-mode BN fold
    keys = jax.random.split(key, len(dims_all))

    padded_weights = []
    true_douts = []
    padded_din0 = _round_up(input_size, LANE)
    prev_padded_dout = padded_din0
    for k, (din, dout, has_bn) in zip(keys, dims_all):
        # kaiming_normal_(mode='fan_out'): PyTorch weight is (dout, din) ->
        # fan_out = dout, std = sqrt(2 / dout).  Stored transposed (din, dout).
        std = (2.0 / dout) ** 0.5
        w = jax.random.normal(k, (dout, din), dtype=jnp.float32) * std
        w_t = jnp.transpose(w)                            # (din, dout)
        if has_bn:
            w_t = w_t * bn_fold                           # fold BN; bias/shift = 0
        padded_dout = _round_up(dout, LANE)
        w_pad = _pad2d(w_t, prev_padded_dout, padded_dout).astype(jnp.bfloat16)
        padded_weights.append(w_pad)
        true_douts.append(dout)
        prev_padded_dout = padded_dout

    feature_ws = padded_weights[:-1]
    wc = padded_weights[-1]
    return feature_ws, wc, true_douts, padded_din0


# --------------------------------------------------------------------------
# Wrapper: single fused pallas_call; returns (logits, x_list).
# x_list[0] is the original (f32) input; later entries are bf16 activations.
# --------------------------------------------------------------------------
def simple_mlp_forward(x, feature_ws, wc, true_douts, padded_din,
                       tb_max=TB_MAX):
    B, din = x.shape
    num_blocks = len(feature_ws)
    weights = list(feature_ws) + [wc]

    padded_douts = tuple(int(w.shape[1]) for w in weights)
    col_offsets = []
    off = 0
    for d in padded_douts:
        col_offsets.append(off)
        off += d
    col_offsets = tuple(col_offsets)
    total_cols = off                         # 896 for the default tail widths

    # cdiv-based batch tiling: tile rows are a multiple of 8 and capped, the
    # batch is zero-padded to a tile multiple (zeros just flow through).
    tb = min(tb_max, _round_up(B, 8))
    b_pad = _round_up(B, tb)

    x_in = x
    if din != padded_din or b_pad != B:
        x_in = jnp.pad(x, ((0, b_pad - B), (0, padded_din - din)))
    grid = (b_pad // tb,)

    in_specs = [pl.BlockSpec((tb, padded_din), lambda i: (i, 0))]
    # Weights: constant index_map -> stay VMEM-resident across batch tiles.
    # (pipeline_mode=pl.Buffered(1) would drop their double buffer; the ~0.3
    #  MiB saved is negligible here so we keep the default for robustness.)
    in_specs += [pl.BlockSpec(w.shape, lambda i: (0, 0)) for w in weights]
    out_spec = pl.BlockSpec((tb, total_cols), lambda i: (i, 0))
    out_shape = jax.ShapeDtypeStruct((b_pad, total_cols), jnp.bfloat16)

    kernel = functools.partial(_mlp_fused_kernel, num_blocks=num_blocks,
                               col_offsets=col_offsets,
                               col_widths=padded_douts)
    slab = pl.pallas_call(
        kernel,
        out_shape=out_shape,
        grid=grid,
        in_specs=in_specs,
        out_specs=out_spec,
        compiler_params=pltpu.CompilerParams(
            dimension_semantics=("parallel",),
            vmem_limit_bytes=VMEM_LIMIT_BYTES),
    )(x_in, *weights)

    # x_list[k] = input to block k; last entry = final features (input to cls).
    x_list = [x]
    for i in range(num_blocks):
        o = col_offsets[i]
        x_list.append(slab[:B, o:o + true_douts[i]])
    oc = col_offsets[-1]
    logits = slab[:B, oc:oc + true_douts[-1]].astype(jnp.float32)
    return logits, x_list


# --------------------------------------------------------------------------
# Pure-JAX reference with identical bf16/f32 arithmetic (correctness check).
# NOTE: inputs/weights are bf16-quantized, so this validates the kernel math,
# not bit-exact f32 PyTorch semantics.
# --------------------------------------------------------------------------
def reference_forward(x, feature_ws, wc, true_douts, padded_din):
    din = x.shape[1]
    h = x
    if din != padded_din:
        h = jnp.pad(h, ((0, 0), (0, padded_din - din)))
    h = h.astype(jnp.bfloat16)
    x_list = [x]
    for w, d in zip(feature_ws, true_douts[:-1]):
        y = jnp.dot(h, w, preferred_element_type=jnp.float32)
        y = jnp.maximum(y, 0.0)
        h = y.astype(jnp.bfloat16)
        x_list.append(h[:, :d])
    logits = jnp.dot(h, wc,
                     preferred_element_type=jnp.float32)[:, :true_douts[-1]]
    return logits, x_list


if __name__ == "__main__":
    # Small config consistent with the module (tail widths 256/128/64 fixed).
    NUM_CLASSES = 2
    INPUT_SIZE = 256
    HIDDEN_SIZE = 128
    HIDDEN_LAYERS = 2
    BATCH = 8

    root = jax.random.PRNGKey(0)
    k_params, k_x = jax.random.split(root)
    feature_ws, wc, true_douts, padded_din = build_params(
        k_params, num_classes=NUM_CLASSES, input_size=INPUT_SIZE,
        hidden_size=HIDDEN_SIZE, hidden_layers=HIDDEN_LAYERS)

    x = jax.random.normal(k_x, (BATCH, INPUT_SIZE), dtype=jnp.float32)

    logits, x_list = simple_mlp_forward(x, feature_ws, wc, true_douts,
                                        padded_din)
    logits = jax.block_until_ready(logits)
    for a in x_list:
        jax.block_until_ready(a)

    # Shape checks: hidden_layers + 3 feature blocks -> x_list has
    # hidden_layers + 4 entries (input to each block + final features).
    assert logits.shape == (BATCH, NUM_CLASSES)
    assert len(x_list) == HIDDEN_LAYERS + 4          # == 6 here
    assert x_list[0].shape == (BATCH, INPUT_SIZE)
    assert x_list[1].shape == (BATCH, HIDDEN_SIZE)
    assert x_list[-1].shape == (BATCH, 64)

    # Numerical check against an identically-quantized pure-JAX reference.
    ref_logits, ref_list = reference_forward(x, feature_ws, wc, true_douts,
                                             padded_din)
    assert jnp.allclose(logits, ref_logits, atol=2e-2, rtol=2e-2)
    for a, b in zip(x_list, ref_list):
        assert jnp.allclose(a.astype(jnp.float32), b.astype(jnp.float32),
                            atol=2e-2, rtol=2e-2)

    print("KERNEL_OK")
</pallas_src>

<mosaic_0001>
module attributes {stable_mosaic.version = 11 : i64} {
  func.func @_mlp_fused_kernel(%arg0: i32, %arg1: memref<8x256xf32, #tpu.memory_space<vmem>>, %arg2: memref<256x128xbf16, #tpu.memory_space<vmem>>, %arg3: memref<128x128xbf16, #tpu.memory_space<vmem>>, %arg4: memref<128x256xbf16, #tpu.memory_space<vmem>>, %arg5: memref<256x128xbf16, #tpu.memory_space<vmem>>, %arg6: memref<128x128xbf16, #tpu.memory_space<vmem>>, %arg7: memref<128x128xbf16, #tpu.memory_space<vmem>>, %arg8: memref<8x896xbf16, #tpu.memory_space<vmem>>) attributes {dimension_semantics = [#tpu.dimension_semantics<parallel>], iteration_bounds = array<i64: 1>, scalar_prefetch = 0 : i64, scratch_operands = 0 : i64, tpu.core_type = #tpu.core_type<tc>, window_params = [{transform_indices = @transform_0, window_bounds = array<i64: 8, 256>}, {pipeline_mode = #tpu.pipeline_mode<synchronous>, transform_indices = @transform_1, window_bounds = array<i64: 256, 128>}, {pipeline_mode = #tpu.pipeline_mode<synchronous>, transform_indices = @transform_2, window_bounds = array<i64: 128, 128>}, {pipeline_mode = #tpu.pipeline_mode<synchronous>, transform_indices = @transform_3, window_bounds = array<i64: 128, 256>}, {pipeline_mode = #tpu.pipeline_mode<synchronous>, transform_indices = @transform_4, window_bounds = array<i64: 256, 128>}, {pipeline_mode = #tpu.pipeline_mode<synchronous>, transform_indices = @transform_5, window_bounds = array<i64: 128, 128>}, {pipeline_mode = #tpu.pipeline_mode<synchronous>, transform_indices = @transform_6, window_bounds = array<i64: 128, 128>}, {transform_indices = @transform_7, window_bounds = array<i64: 8, 896>}]} {
    %c0 = arith.constant 0 : index
    %c0_0 = arith.constant 0 : index
    %0 = vector.load %arg1[%c0, %c0_0] : memref<8x256xf32, #tpu.memory_space<vmem>>, vector<8x256xf32>
    %1 = arith.truncf %0 : vector<8x256xf32> to vector<8x256xbf16>
    %c0_1 = arith.constant 0 : index
    %c0_2 = arith.constant 0 : index
    %2 = vector.load %arg2[%c0_1, %c0_2] : memref<256x128xbf16, #tpu.memory_space<vmem>>, vector<256x128xbf16>
    %cst = arith.constant dense<0.000000e+00> : vector<8x128xf32>
    %3 = tpu.matmul %1, %2, %cst {dimension_numbers = #tpu.dot_dimension_numbers<[1], [0], [0], [1], [0, 0, 1, 1], [], []>} : vector<8x256xbf16>, vector<256x128xbf16>, vector<8x128xf32> -> vector<8x128xf32>
    %cst_3 = arith.constant 0.000000e+00 : f32
    %4 = vector.broadcast %cst_3 : f32 to vector<8x128xf32>
    %5 = arith.maximumf %3, %4 : vector<8x128xf32>
    %6 = arith.truncf %5 : vector<8x128xf32> to vector<8x128xbf16>
    %c0_4 = arith.constant 0 : index
    %c0_5 = arith.constant 0 : index
    %7 = vector.load %arg8[%c0_4, %c0_5] : memref<8x896xbf16, #tpu.memory_space<vmem>>, vector<8x128xbf16>
    tpu.vector_store %arg8[%c0_4, %c0_5], %6 {strides = array<i32>} : memref<8x896xbf16, #tpu.memory_space<vmem>>, vector<8x128xbf16>,
    %c0_6 = arith.constant 0 : index
    %c0_7 = arith.constant 0 : index
    %8 = vector.load %arg3[%c0_6, %c0_7] : memref<128x128xbf16, #tpu.memory_space<vmem>>, vector<128x128xbf16>
    %cst_8 = arith.constant dense<0.000000e+00> : vector<8x128xf32>
    %9 = tpu.matmul %6, %8, %cst_8 {dimension_numbers = #tpu.dot_dimension_numbers<[1], [0], [0], [1], [0, 0, 1, 1], [], []>} : vector<8x128xbf16>, vector<128x128xbf16>, vector<8x128xf32> -> vector<8x128xf32>
    %cst_9 = arith.constant 0.000000e+00 : f32
    %10 = vector.broadcast %cst_9 : f32 to vector<8x128xf32>
    %11 = arith.maximumf %9, %10 : vector<8x128xf32>
    %12 = arith.truncf %11 : vector<8x128xf32> to vector<8x128xbf16>
    %c0_10 = arith.constant 0 : index
    %c128 = arith.constant 128 : index
    %13 = vector.load %arg8[%c0_10, %c128] : memref<8x896xbf16, #tpu.memory_space<vmem>>, vector<8x128xbf16>
    tpu.vector_store %arg8[%c0_10, %c128], %12 {strides = array<i32>} : memref<8x896xbf16, #tpu.memory_space<vmem>>, vector<8x128xbf16>,
    %c0_11 = arith.constant 0 : index
    %c0_12 = arith.constant 0 : index
    %14 = vector.load %arg4[%c0_11, %c0_12] : memref<128x256xbf16, #tpu.memory_space<vmem>>, vector<128x256xbf16>
    %cst_13 = arith.constant dense<0.000000e+00> : vector<8x256xf32>
    %15 = tpu.matmul %12, %14, %cst_13 {dimension_numbers = #tpu.dot_dimension_numbers<[1], [0], [0], [1], [0, 0, 1, 1], [], []>} : vector<8x128xbf16>, vector<128x256xbf16>, vector<8x256xf32> -> vector<8x256xf32>
    %cst_14 = arith.constant 0.000000e+00 : f32
    %16 = vector.broadcast %cst_14 : f32 to vector<8x256xf32>
    %17 = arith.maximumf %15, %16 : vector<8x256xf32>
    %18 = arith.truncf %17 : vector<8x256xf32> to vector<8x256xbf16>
    %c0_15 = arith.constant 0 : index
    %c256 = arith.constant 256 : index
    %19 = vector.load %arg8[%c0_15, %c256] : memref<8x896xbf16, #tpu.memory_space<vmem>>, vector<8x256xbf16>
    tpu.vector_store %arg8[%c0_15, %c256], %18 {strides = array<i32>} : memref<8x896xbf16, #tpu.memory_space<vmem>>, vector<8x256xbf16>,
    %c0_16 = arith.constant 0 : index
    %c0_17 = arith.constant 0 : index
    %20 = vector.load %arg5[%c0_16, %c0_17] : memref<256x128xbf16, #tpu.memory_space<vmem>>, vector<256x128xbf16>
    %cst_18 = arith.constant dense<0.000000e+00> : vector<8x128xf32>
    %21 = tpu.matmul %18, %20, %cst_18 {dimension_numbers = #tpu.dot_dimension_numbers<[1], [0], [0], [1], [0, 0, 1, 1], [], []>} : vector<8x256xbf16>, vector<256x128xbf16>, vector<8x128xf32> -> vector<8x128xf32>
    %cst_19 = arith.constant 0.000000e+00 : f32
    %22 = vector.broadcast %cst_19 : f32 to vector<8x128xf32>
    %23 = arith.maximumf %21, %22 : vector<8x128xf32>
    %24 = arith.truncf %23 : vector<8x128xf32> to vector<8x128xbf16>
    %c0_20 = arith.constant 0 : index
    %c512 = arith.constant 512 : index
    %25 = vector.load %arg8[%c0_20, %c512] : memref<8x896xbf16, #tpu.memory_space<vmem>>, vector<8x128xbf16>
    tpu.vector_store %arg8[%c0_20, %c512], %24 {strides = array<i32>} : memref<8x896xbf16, #tpu.memory_space<vmem>>, vector<8x128xbf16>,
    %c0_21 = arith.constant 0 : index
    %c0_22 = arith.constant 0 : index
    %26 = vector.load %arg6[%c0_21, %c0_22] : memref<128x128xbf16, #tpu.memory_space<vmem>>, vector<128x128xbf16>
    %cst_23 = arith.constant dense<0.000000e+00> : vector<8x128xf32>
    %27 = tpu.matmul %24, %26, %cst_23 {dimension_numbers = #tpu.dot_dimension_numbers<[1], [0], [0], [1], [0, 0, 1, 1], [], []>} : vector<8x128xbf16>, vector<128x128xbf16>, vector<8x128xf32> -> vector<8x128xf32>
    %cst_24 = arith.constant 0.000000e+00 : f32
    %28 = vector.broadcast %cst_24 : f32 to vector<8x128xf32>
    %29 = arith.maximumf %27, %28 : vector<8x128xf32>
    %30 = arith.truncf %29 : vector<8x128xf32> to vector<8x128xbf16>
    %c0_25 = arith.constant 0 : index
    %c640 = arith.constant 640 : index
    %31 = vector.load %arg8[%c0_25, %c640] : memref<8x896xbf16, #tpu.memory_space<vmem>>, vector<8x128xbf16>
    tpu.vector_store %arg8[%c0_25, %c640], %30 {strides = array<i32>} : memref<8x896xbf16, #tpu.memory_space<vmem>>, vector<8x128xbf16>,
    %c0_26 = arith.constant 0 : index
    %c0_27 = arith.constant 0 : index
    %32 = vector.load %arg7[%c0_26, %c0_27] : memref<128x128xbf16, #tpu.memory_space<vmem>>, vector<128x128xbf16>
    %cst_28 = arith.constant dense<0.000000e+00> : vector<8x128xf32>
    %33 = tpu.matmul %30, %32, %cst_28 {dimension_numbers = #tpu.dot_dimension_numbers<[1], [0], [0], [1], [0, 0, 1, 1], [], []>} : vector<8x128xbf16>, vector<128x128xbf16>, vector<8x128xf32> -> vector<8x128xf32>
    %34 = arith.truncf %33 : vector<8x128xf32> to vector<8x128xbf16>
    %c0_29 = arith.constant 0 : index
    %c768 = arith.constant 768 : index
    %35 = vector.load %arg8[%c0_29, %c768] : memref<8x896xbf16, #tpu.memory_space<vmem>>, vector<8x128xbf16>
    tpu.vector_store %arg8[%c0_29, %c768], %34 {strides = array<i32>} : memref<8x896xbf16, #tpu.memory_space<vmem>>, vector<8x128xbf16>,
    return
  }
  func.func @transform_0(%arg0: i32) -> (i32, i32) {
    %c0_i32 = arith.constant 0 : i32
    %c0_i32_0 = arith.constant 0 : i32
    return %arg0, %c0_i32 : i32, i32
  }
  func.func @transform_1(%arg0: i32) -> (i32, i32) {
    %c0_i32 = arith.constant 0 : i32
    %c0_i32_0 = arith.constant 0 : i32
    %c0_i32_1 = arith.constant 0 : i32
    return %c0_i32, %c0_i32_0 : i32, i32
  }
  func.func @transform_2(%arg0: i32) -> (i32, i32) {
    %c0_i32 = arith.constant 0 : i32
    %c0_i32_0 = arith.constant 0 : i32
    %c0_i32_1 = arith.constant 0 : i32
    return %c0_i32, %c0_i32_0 : i32, i32
  }
  func.func @transform_3(%arg0: i32) -> (i32, i32) {
    %c0_i32 = arith.constant 0 : i32
    %c0_i32_0 = arith.constant 0 : i32
    %c0_i32_1 = arith.constant 0 : i32
    return %c0_i32, %c0_i32_0 : i32, i32
  }
  func.func @transform_4(%arg0: i32) -> (i32, i32) {
    %c0_i32 = arith.constant 0 : i32
    %c0_i32_0 = arith.constant 0 : i32
    %c0_i32_1 = arith.constant 0 : i32
    return %c0_i32, %c0_i32_0 : i32, i32
  }
  func.func @transform_5(%arg0: i32) -> (i32, i32) {
    %c0_i32 = arith.constant 0 : i32
    %c0_i32_0 = arith.constant 0 : i32
    %c0_i32_1 = arith.constant 0 : i32
    return %c0_i32, %c0_i32_0 : i32, i32
  }
  func.func @transform_6(%arg0: i32) -> (i32, i32) {
    %c0_i32 = arith.constant 0 : i32
    %c0_i32_0 = arith.constant 0 : i32
    %c0_i32_1 = arith.constant 0 : i32
    return %c0_i32, %c0_i32_0 : i32, i32
  }
  func.func @transform_7(%arg0: i32) -> (i32, i32) {
    %c0_i32 = arith.constant 0 : i32
    %c0_i32_0 = arith.constant 0 : i32
    return %arg0, %c0_i32 : i32, i32
  }
}

</mosaic_0001>

<llo_original>
// kernel: tpu_custom_call.1
$region0: #{tpu_custom_call.1}
  #allocation0 [shape = 'u32[]', space=smem, size = 0x4, offset = 0x4, fixed_abs, tag = 'smem constant byte address 0x4 - core index']
  #allocation1 [shape = 'u32[144,128]{1,0:T(1,128)}', space=vmem, size = 0x12000, scoped, tag = 'internal scratch']
  %s0 = inlined_call_operand.hbm [shape: f32[8,256], index: 0, kind: input, shape index: {}]
  %s1 = inlined_call_operand.hbm [shape: bf16[256,128], index: 1, kind: input, shape index: {}]
  %s2 = inlined_call_operand.hbm [shape: bf16[128,128], index: 2, kind: input, shape index: {}]
  %s3 = inlined_call_operand.hbm [shape: bf16[128,256], index: 3, kind: input, shape index: {}]
  %s4 = inlined_call_operand.hbm [shape: bf16[256,128], index: 4, kind: input, shape index: {}]
  %s5 = inlined_call_operand.hbm [shape: bf16[128,128], index: 5, kind: input, shape index: {}]
  %s6 = inlined_call_operand.hbm [shape: bf16[128,128], index: 6, kind: input, shape index: {}]
  %s7 = inlined_call_operand.hbm [shape: bf16[8,896], index: 7, kind: output, shape index: {}]
  %s8 = sld [smem:[#allocation0]]
  $region66: #{tpu_custom_call.1} parent=0
    _
  %s10 = ssub.s32 1, %s8
  %s11 = scalar_select 0, %s10, %s8
  $region1: #{tpu_custom_call.1} parent=0
    #allocation2 [shape = 'u8[8192]{0}', space=vmem, size = 0x2000, scoped, tag = 'input window, operand 0, single buffered']
    #allocation3 [shape = 's32[1]{0}', space=sflag, size = 0x4, scoped, tag = 'scoped memory for tpu_custom_call.1']
    #allocation4 [shape = 's32[1]{0}', space=sflag, size = 0x4, scoped, tag = 'scoped memory for tpu_custom_call.1']
    #allocation5 [shape = 'u8[65536]{0}', space=vmem, size = 0x10000, scoped, tag = 'input window, operand 1, single buffered']
    #allocation6 [shape = 's32[1]{0}', space=sflag, size = 0x4, scoped, tag = 'scoped memory for tpu_custom_call.1']
    #allocation7 [shape = 'u8[32768]{0}', space=vmem, size = 0x8000, scoped, tag = 'input window, operand 2, single buffered']
    #allocation8 [shape = 'u8[65536]{0}', space=vmem, size = 0x10000, scoped, tag = 'input window, operand 3, single buffered']
    #allocation9 [shape = 's32[1]{0}', space=sflag, size = 0x4, scoped, tag = 'scoped memory for tpu_custom_call.1']
    #allocation10 [shape = 'u8[65536]{0}', space=vmem, size = 0x10000, scoped, tag = 'input window, operand 4, single buffered']
    #allocation11 [shape = 'u8[32768]{0}', space=vmem, size = 0x8000, scoped, tag = 'input window, operand 5, single buffered']
    #allocation12 [shape = 's32[1]{0}', space=sflag, size = 0x4, scoped, tag = 'scoped memory for tpu_custom_call.1']
    #allocation13 [shape = 'u8[32768]{0}', space=vmem, size = 0x8000, scoped, tag = 'input window, operand 6, single buffered']
    #allocation14 [shape = 'u8[14336]{0}', space=vmem, size = 0x3800, scoped, tag = 'output window, operand 0, single buffered']
    %12 = vsyncpa [#allocation3], 0
    %13 = vsyncpa [#allocation6], 0
    %14 = vsyncpa [#allocation9], 0
    %15 = vsyncpa [#allocation12], 0
    %16 = vsyncpa [#allocation4], 0
    // Predicated region
    $region2: #{tpu_custom_call.1} parent=1 // pred_check
      _
    $region3: #{tpu_custom_call.1} parent=1 // pred_check_branch
      %18 = sbr.rel (0) target = $region5
    $region4: #{tpu_custom_call.1} parent=1 // pred_region
      %s20 = ssub.s32 256, 256
      %21 = vsyncadd [#allocation3], %s20
      %s23 = sshll.u32 [#allocation2], 4
      %s24 = int_to_ptr.vmem [resolvable:$true] %s23
      %26 = dma.hbm_to_vmem [thread:$0]  %s0, 256, %s24, [#allocation3]
    $region5: #{tpu_custom_call.1} parent=1 // pred_fallthru
      _
    // Predicated region
    $region6: #{tpu_custom_call.1} parent=1 // pred_check
      _
    $region7: #{tpu_custom_call.1} parent=1 // pred_check_branch
      %28 = sbr.rel (0) target = $region9
    $region8: #{tpu_custom_call.1} parent=1 // pred_region
      %s30 = ssub.s32 2048, 2048
      %31 = vsyncadd [#allocation6], %s30
      %s32 = sshll.u32 [#allocation5], 4
      %s33 = int_to_ptr.vmem [resolvable:$true] %s32
      %38 = dma.hbm_to_vmem [thread:$0]  %s1, 2048, %s33, [#allocation6], 64, 64, 4
    $region9: #{tpu_custom_call.1} parent=1 // pred_fallthru
      _
    // Predicated region
    $region10: #{tpu_custom_call.1} parent=1 // pred_check
      _
    $region11: #{tpu_custom_call.1} parent=1 // pred_check_branch
      %40 = sbr.rel (0) target = $region13
    $region12: #{tpu_custom_call.1} parent=1 // pred_region
      %s42 = ssub.s32 1024, 1024
      %43 = vsyncadd [#allocation6], %s42
      %s44 = sshll.u32 [#allocation7], 4
      %s45 = int_to_ptr.vmem [resolvable:$true] %s44
      %50 = dma.hbm_to_vmem [thread:$0]  %s2, 1024, %s45, [#allocation6], 64, 64, 4
    $region13: #{tpu_custom_call.1} parent=1 // pred_fallthru
      _
    // Predicated region
    $region14: #{tpu_custom_call.1} parent=1 // pred_check
      _
    $region15: #{tpu_custom_call.1} parent=1 // pred_check_branch
      %52 = sbr.rel (0) target = $region17
    $region16: #{tpu_custom_call.1} parent=1 // pred_region
      %s54 = ssub.s32 2048, 2048
      %55 = vsyncadd [#allocation9], %s54
      %s56 = sshll.u32 [#allocation8], 4
      %s57 = int_to_ptr.vmem [resolvable:$true] %s56
      %62 = dma.hbm_to_vmem [thread:$0]  %s3, 2048, %s57, [#allocation9], 128, 128, 8
    $region17: #{tpu_custom_call.1} parent=1 // pred_fallthru
      _
    // Predicated region
    $region18: #{tpu_custom_call.1} parent=1 // pred_check
      _
    $region19: #{tpu_custom_call.1} parent=1 // pred_check_branch
      %64 = sbr.rel (0) target = $region21
    $region20: #{tpu_custom_call.1} parent=1 // pred_region
      %s66 = ssub.s32 2048, 2048
      %67 = vsyncadd [#allocation9], %s66
      %s68 = sshll.u32 [#allocation10], 4
      %s69 = int_to_ptr.vmem [resolvable:$true] %s68
      %74 = dma.hbm_to_vmem [thread:$0]  %s4, 2048, %s69, [#allocation9], 64, 64, 4
    $region21: #{tpu_custom_call.1} parent=1 // pred_fallthru
      _
    // Predicated region
    $region22: #{tpu_custom_call.1} parent=1 // pred_check
      _
    $region23: #{tpu_custom_call.1} parent=1 // pred_check_branch
      %76 = sbr.rel (0) target = $region25
    $region24: #{tpu_custom_call.1} parent=1 // pred_region
      %s78 = ssub.s32 1024, 1024
      %79 = vsyncadd [#allocation12], %s78
      %s80 = sshll.u32 [#allocation11], 4
      %s81 = int_to_ptr.vmem [resolvable:$true] %s80
      %86 = dma.hbm_to_vmem [thread:$0]  %s5, 1024, %s81, [#allocation12], 64, 64, 4
    $region25: #{tpu_custom_call.1} parent=1 // pred_fallthru
      _
    // Predicated region
    $region26: #{tpu_custom_call.1} parent=1 // pred_check
      _
    $region27: #{tpu_custom_call.1} parent=1 // pred_check_branch
      %88 = sbr.rel (0) target = $region29
    $region28: #{tpu_custom_call.1} parent=1 // pred_region
      %s90 = ssub.s32 1024, 1024
      %91 = vsyncadd [#allocation12], %s90
      %s92 = sshll.u32 [#allocation13], 4
      %s93 = int_to_ptr.vmem [resolvable:$true] %s92
      %98 = dma.hbm_to_vmem [thread:$0]  %s6, 1024, %s93, [#allocation12], 64, 64, 4
    $region29: #{tpu_custom_call.1} parent=1 // pred_fallthru
      _
    // Predicated region
    $region30: #{tpu_custom_call.1} parent=1 // pred_check
      _
    $region31: #{tpu_custom_call.1} parent=1 // pred_check_branch
      %100 = sbr.rel (0) target = $region33
    $region32: #{tpu_custom_call.1} parent=1 // pred_region
      %101 = dma.done [#allocation3], 256
    $region33: #{tpu_custom_call.1} parent=1 // pred_fallthru
      _
    // Predicated region
    $region34: #{tpu_custom_call.1} parent=1 // pred_check
      _
    $region35: #{tpu_custom_call.1} parent=1 // pred_check_branch
      %103 = sbr.rel (0) target = $region37
    $region36: #{tpu_custom_call.1} parent=1 // pred_region
      %104 = dma.done [#allocation6], 2048
    $region37: #{tpu_custom_call.1} parent=1 // pred_fallthru
      _
    // Predicated region
    $region38: #{tpu_custom_call.1} parent=1 // pred_check
      _
    $region39: #{tpu_custom_call.1} parent=1 // pred_check_branch
      %106 = sbr.rel (0) target = $region41
    $region40: #{tpu_custom_call.1} parent=1 // pred_region
      %107 = dma.done [#allocation6], 1024
    $region41: #{tpu_custom_call.1} parent=1 // pred_fallthru
      _
    // Predicated region
    $region42: #{tpu_custom_call.1} parent=1 // pred_check
      _
    $region43: #{tpu_custom_call.1} parent=1 // pred_check_branch
      %109 = sbr.rel (0) target = $region45
    $region44: #{tpu_custom_call.1} parent=1 // pred_region
      %110 = dma.done [#allocation9], 2048
    $region45: #{tpu_custom_call.1} parent=1 // pred_fallthru
      _
    // Predicated region
    $region46: #{tpu_custom_call.1} parent=1 // pred_check
      _
    $region47: #{tpu_custom_call.1} parent=1 // pred_check_branch
      %112 = sbr.rel (0) target = $region49
    $region48: #{tpu_custom_call.1} parent=1 // pred_region
      %113 = dma.done [#allocation9], 2048
    $region49: #{tpu_custom_call.1} parent=1 // pred_fallthru
      _
    // Predicated region
    $region50: #{tpu_custom_call.1} parent=1 // pred_check
      _
    $region51: #{tpu_custom_call.1} parent=1 // pred_check_branch
      %115 = sbr.rel (0) target = $region53
    $region52: #{tpu_custom_call.1} parent=1 // pred_region
      %116 = dma.done [#allocation12], 1024
    $region53: #{tpu_custom_call.1} parent=1 // pred_fallthru
      _
    // Predicated region
    $region54: #{tpu_custom_call.1} parent=1 // pred_check
      _
    $region55: #{tpu_custom_call.1} parent=1 // pred_check_branch
      %118 = sbr.rel (0) target = $region57
    $region56: #{tpu_custom_call.1} parent=1 // pred_region
      %119 = dma.done [#allocation12], 1024
    $region57: #{tpu_custom_call.1} parent=1 // pred_fallthru
      _
    %v121 = vld [vmem:[#allocation2] sm:$0xff]
    %v122 = vld [vmem:[#allocation2 + $0x8] sm:$0xff]
    %v123 = vpack.c.bf16 %v121, %v121
    %v124 = vpack.c.bf16 %v122, %v122
    %v125 = vld [vmem:[#allocation5] sm:$0xf]
    %v126 = vld [vmem:[#allocation5 + $0x4] sm:$0xf]
    %v127 = vld [vmem:[#allocation5 + $0x8] sm:$0xf]
    %v128 = vld [vmem:[#allocation5 + $0xc] sm:$0xf]
    %v129 = vld [vmem:[#allocation5 + $0x10] sm:$0xf]
    %v130 = vld [vmem:[#allocation5 + $0x14] sm:$0xf]
    %v131 = vld [vmem:[#allocation5 + $0x18] sm:$0xf]
    %v132 = vld [vmem:[#allocation5 + $0x1c] sm:$0xf]
    %v133 = vld [vmem:[#allocation5 + $0x20] sm:$0xf]
    %v134 = vld [vmem:[#allocation5 + $0x24] sm:$0xf]
    %v135 = vld [vmem:[#allocation5 + $0x28] sm:$0xf]
    %v136 = vld [vmem:[#allocation5 + $0x2c] sm:$0xf]
    %v137 = vld [vmem:[#allocation5 + $0x30] sm:$0xf]
    %v138 = vld [vmem:[#allocation5 + $0x34] sm:$0xf]
    %v139 = vld [vmem:[#allocation5 + $0x38] sm:$0xf]
    %v140 = vld [vmem:[#allocation5 + $0x3c] sm:$0xf]
    %v141 = vld [vmem:[#allocation5 + $0x40] sm:$0xf]
    %v142 = vld [vmem:[#allocation5 + $0x44] sm:$0xf]
    %v143 = vld [vmem:[#allocation5 + $0x48] sm:$0xf]
    %v144 = vld [vmem:[#allocation5 + $0x4c] sm:$0xf]
    %v145 = vld [vmem:[#allocation5 + $0x50] sm:$0xf]
    %v146 = vld [vmem:[#allocation5 + $0x54] sm:$0xf]
    %v147 = vld [vmem:[#allocation5 + $0x58] sm:$0xf]
    %v148 = vld [vmem:[#allocation5 + $0x5c] sm:$0xf]
    %v149 = vld [vmem:[#allocation5 + $0x60] sm:$0xf]
    %v150 = vld [vmem:[#allocation5 + $0x64] sm:$0xf]
    %v151 = vld [vmem:[#allocation5 + $0x68] sm:$0xf]
    %v152 = vld [vmem:[#allocation5 + $0x6c] sm:$0xf]
    %v153 = vld [vmem:[#allocation5 + $0x70] sm:$0xf]
    %v154 = vld [vmem:[#allocation5 + $0x74] sm:$0xf]
    %v155 = vld [vmem:[#allocation5 + $0x78] sm:$0xf]
    %v156 = vld [vmem:[#allocation5 + $0x7c] sm:$0xf]
    %v189 = vunpack.c.l.b16 %v125
    %v190 = vunpack.c.l.b16 %v126
    %v191 = vunpack.c.l.b16 %v127
    %v192 = vunpack.c.l.b16 %v128
    %v193 = vunpack.c.l.b16 %v129
    %v194 = vunpack.c.l.b16 %v130
    %v195 = vunpack.c.l.b16 %v131
    %v196 = vunpack.c.l.b16 %v132
    %v197 = vunpack.c.l.b16 %v133
    %v198 = vunpack.c.l.b16 %v134
    %v199 = vunpack.c.l.b16 %v135
    %v200 = vunpack.c.l.b16 %v136
    %v201 = vunpack.c.l.b16 %v137
    %v202 = vunpack.c.l.b16 %v138
    %v203 = vunpack.c.l.b16 %v139
    %v204 = vunpack.c.l.b16 %v140
    %v205 = vunpack.c.l.b16 %v141
    %v206 = vunpack.c.l.b16 %v142
    %v207 = vunpack.c.l.b16 %v143
    %v208 = vunpack.c.l.b16 %v144
    %v209 = vunpack.c.l.b16 %v145
    %v210 = vunpack.c.l.b16 %v146
    %v211 = vunpack.c.l.b16 %v147
    %v212 = vunpack.c.l.b16 %v148
    %v213 = vunpack.c.l.b16 %v149
    %v214 = vunpack.c.l.b16 %v150
    %v215 = vunpack.c.l.b16 %v151
    %v216 = vunpack.c.l.b16 %v152
    %v217 = vunpack.c.l.b16 %v153
    %v218 = vunpack.c.l.b16 %v154
    %v219 = vunpack.c.l.b16 %v155
    %v220 = vunpack.c.l.b16 %v156
    %v221 = vpack.c.b16 %v190, %v189
    %v222 = vpack.c.b16 %v192, %v191
    %v223 = vpack.c.b16 %v194, %v193
    %v224 = vpack.c.b16 %v196, %v195
    %v225 = vpack.c.b16 %v198, %v197
    %v226 = vpack.c.b16 %v200, %v199
    %v227 = vpack.c.b16 %v202, %v201
    %v228 = vpack.c.b16 %v204, %v203
    %v229 = vpack.c.b16 %v206, %v205
    %v230 = vpack.c.b16 %v208, %v207
    %v231 = vpack.c.b16 %v210, %v209
    %v232 = vpack.c.b16 %v212, %v211
    %v233 = vpack.c.b16 %v214, %v213
    %v234 = vpack.c.b16 %v216, %v215
    %v235 = vpack.c.b16 %v218, %v217
    %v236 = vpack.c.b16 %v220, %v219
    %253 = vmatprep.subr.bf16.mxu0 0
    %254 = vmatpush1.bf16.msra.mxu0 %v228
    %255 = vmatprep.subr.bf16.mxu0 0
    %256 = vmatpush1.bf16.msra.mxu0 %v227
    %257 = vmatprep.subr.bf16.mxu0 0
    %258 = vmatpush1.bf16.msra.mxu0 %v226
    %259 = vmatprep.subr.bf16.mxu0 0
    %260 = vmatpush1.bf16.msra.mxu0 %v225
    %261 = vmatprep.subr.bf16.mxu0 0
    %262 = vmatpush1.bf16.msra.mxu0 %v224
    %263 = vmatprep.subr.bf16.mxu0 0
    %264 = vmatpush1.bf16.msra.mxu0 %v223
    %265 = vmatprep.subr.bf16.mxu0 0
    %266 = vmatpush1.bf16.msra.mxu0 %v222
    %267 = vmatprep.subr.bf16.mxu0 0
    %268 = vmatpush1.bf16.msra.mxu0 %v221
    %269 = vmatprep.subr.bf16.mxu0 0
    %270 = vmatpush2.bf16.msra.mxu0 %v236
    %271 = vmatprep.subr.bf16.mxu0 0
    %272 = vmatpush2.bf16.msra.mxu0 %v235
    %273 = vmatprep.subr.bf16.mxu0 0
    %274 = vmatpush2.bf16.msra.mxu0 %v234
    %275 = vmatprep.subr.bf16.mxu0 0
    %276 = vmatpush2.bf16.msra.mxu0 %v233
    %277 = vmatprep.subr.bf16.mxu0 0
    %278 = vmatpush2.bf16.msra.mxu0 %v232
    %279 = vmatprep.subr.bf16.mxu0 0
    %280 = vmatpush2.bf16.msra.mxu0 %v231
    %281 = vmatprep.subr.bf16.mxu0 0
    %282 = vmatpush2.bf16.msra.mxu0 %v230
    %283 = vmatprep.subr.bf16.mxu0 0
    %284 = vmatpush2.bf16.msra.mxu0 %v229
    %285 = vmatprep.mubr.bf16.mxu0 %v124
    %286 = vmatmul.mubr.bf16.gmra.mxu0 %v123
    %v287 = vpop.f32.mrf.mxu0
    %v288 = vadd.f32 0.0, %v287
    %v289 = vpop.f32.mrf.mxu0
    %v290 = vpop.f32.mrf.mxu0
    %v291 = vpop.f32.mrf.mxu0
    %292 = vdwg.mxu0
    %v293 = vmax.f32 %v288, 0.0
    %v294 = vpack.c.bf16 %v293, %v293
    %295 = vst [vmem:[#allocation14] sm:$0xf] %v294
    %v296 = vld [vmem:[#allocation7] sm:$0xf]
    %v297 = vld [vmem:[#allocation7 + $0x4] sm:$0xf]
    %v298 = vld [vmem:[#allocation7 + $0x8] sm:$0xf]
    %v299 = vld [vmem:[#allocation7 + $0xc] sm:$0xf]
    %v300 = vld [vmem:[#allocation7 + $0x10] sm:$0xf]
    %v301 = vld [vmem:[#allocation7 + $0x14] sm:$0xf]
    %v302 = vld [vmem:[#allocation7 + $0x18] sm:$0xf]
    %v303 = vld [vmem:[#allocation7 + $0x1c] sm:$0xf]
    %v304 = vld [vmem:[#allocation7 + $0x20] sm:$0xf]
    %v305 = vld [vmem:[#allocation7 + $0x24] sm:$0xf]
    %v306 = vld [vmem:[#allocation7 + $0x28] sm:$0xf]
    %v307 = vld [vmem:[#allocation7 + $0x2c] sm:$0xf]
    %v308 = vld [vmem:[#allocation7 + $0x30] sm:$0xf]
    %v309 = vld [vmem:[#allocation7 + $0x34] sm:$0xf]
    %v310 = vld [vmem:[#allocation7 + $0x38] sm:$0xf]
    %v311 = vld [vmem:[#allocation7 + $0x3c] sm:$0xf]
    %v328 = vunpack.c.l.b16 %v296
    %v329 = vunpack.c.l.b16 %v297
    %v330 = vunpack.c.l.b16 %v298
    %v331 = vunpack.c.l.b16 %v299
    %v332 = vunpack.c.l.b16 %v300
    %v333 = vunpack.c.l.b16 %v301
    %v334 = vunpack.c.l.b16 %v302
    %v335 = vunpack.c.l.b16 %v303
    %v336 = vunpack.c.l.b16 %v304
    %v337 = vunpack.c.l.b16 %v305
    %v338 = vunpack.c.l.b16 %v306
    %v339 = vunpack.c.l.b16 %v307
    %v340 = vunpack.c.l.b16 %v308
    %v341 = vunpack.c.l.b16 %v309
    %v342 = vunpack.c.l.b16 %v310
    %v343 = vunpack.c.l.b16 %v311
    %v344 = vpack.c.b16 %v329, %v328
    %v345 = vpack.c.b16 %v331, %v330
    %v346 = vpack.c.b16 %v333, %v332
    %v347 = vpack.c.b16 %v335, %v334
    %v348 = vpack.c.b16 %v337, %v336
    %v349 = vpack.c.b16 %v339, %v338
    %v350 = vpack.c.b16 %v341, %v340
    %v351 = vpack.c.b16 %v343, %v342
    %360 = vmatprep.subr.bf16.mxu0 0
    %361 = vmatpush1.bf16.msra.mxu0 %v351
    %362 = vmatprep.subr.bf16.mxu0 0
    %363 = vmatpush1.bf16.msra.mxu0 %v350
    %364 = vmatprep.subr.bf16.mxu0 0
    %365 = vmatpush1.bf16.msra.mxu0 %v349
    %366 = vmatprep.subr.bf16.mxu0 0
    %367 = vmatpush1.bf16.msra.mxu0 %v348
    %368 = vmatprep.subr.bf16.mxu0 0
    %369 = vmatpush1.bf16.msra.mxu0 %v347
    %370 = vmatprep.subr.bf16.mxu0 0
    %371 = vmatpush1.bf16.msra.mxu0 %v346
    %372 = vmatprep.subr.bf16.mxu0 0
    %373 = vmatpush1.bf16.msra.mxu0 %v345
    %374 = vmatprep.subr.bf16.mxu0 0
    %375 = vmatpush1.bf16.msra.mxu0 %v344
    %376 = vmatprep.subr.bf16.mxu0 0
    %377 = vmatpush2.bf16.msra.mxu0 0
    %378 = vmatprep.subr.bf16.mxu0 0
    %379 = vmatpush2.bf16.msra.mxu0 0
    %380 = vmatprep.subr.bf16.mxu0 0
    %381 = vmatpush2.bf16.msra.mxu0 0
    %382 = vmatprep.subr.bf16.mxu0 0
    %383 = vmatpush2.bf16.msra.mxu0 0
    %384 = vmatprep.subr.bf16.mxu0 0
    %385 = vmatpush2.bf16.msra.mxu0 0
    %386 = vmatprep.subr.bf16.mxu0 0
    %387 = vmatpush2.bf16.msra.mxu0 0
    %388 = vmatprep.subr.bf16.mxu0 0
    %389 = vmatpush2.bf16.msra.mxu0 0
    %390 = vmatprep.subr.bf16.mxu0 0
    %391 = vmatpush2.bf16.msra.mxu0 0
    %392 = vmatprep.mubr.bf16.mxu0 0
    %393 = vmatmul.mubr.bf16.gmra.mxu0 %v294
    %v394 = vpop.f32.mrf.mxu0
    %v395 = vadd.f32 0.0, %v394
    %v396 = vpop.f32.mrf.mxu0
    %v397 = vpop.f32.mrf.mxu0
    %v398 = vpop.f32.mrf.mxu0
    %399 = vdwg.mxu0
    %v400 = vmax.f32 %v395, 0.0
    %v401 = vpack.c.bf16 %v400, %v400
    %402 = vst [vmem:[#allocation14 + $0x4] sm:$0xf] %v401
    %v403 = vld [vmem:[#allocation8] sm:$0xff]
    %v404 = vld [vmem:[#allocation8 + $0x8] sm:$0xff]
    %v405 = vld [vmem:[#allocation8 + $0x10] sm:$0xff]
    %v406 = vld [vmem:[#allocation8 + $0x18] sm:$0xff]
    %v407 = vld [vmem:[#allocation8 + $0x20] sm:$0xff]
    %v408 = vld [vmem:[#allocation8 + $0x28] sm:$0xff]
    %v409 = vld [vmem:[#allocation8 + $0x30] sm:$0xff]
    %v410 = vld [vmem:[#allocation8 + $0x38] sm:$0xff]
    %v411 = vld [vmem:[#allocation8 + $0x40] sm:$0xff]
    %v412 = vld [vmem:[#allocation8 + $0x48] sm:$0xff]
    %v413 = vld [vmem:[#allocation8 + $0x50] sm:$0xff]
    %v414 = vld [vmem:[#allocation8 + $0x58] sm:$0xff]
    %v415 = vld [vmem:[#allocation8 + $0x60] sm:$0xff]
    %v416 = vld [vmem:[#allocation8 + $0x68] sm:$0xff]
    %v417 = vld [vmem:[#allocation8 + $0x70] sm:$0xff]
    %v418 = vld [vmem:[#allocation8 + $0x78] sm:$0xff]
    %v435 = vunpack.c.l.b16 %v403
    %v436 = vunpack.c.h.b16 %v403
    %v437 = vunpack.c.l.b16 %v404
    %v438 = vunpack.c.h.b16 %v404
    %v439 = vunpack.c.l.b16 %v405
    %v440 = vunpack.c.h.b16 %v405
    %v441 = vunpack.c.l.b16 %v406
    %v442 = vunpack.c.h.b16 %v406
    %v443 = vunpack.c.l.b16 %v407
    %v444 = vunpack.c.h.b16 %v407
    %v445 = vunpack.c.l.b16 %v408
    %v446 = vunpack.c.h.b16 %v408
    %v447 = vunpack.c.l.b16 %v409
    %v448 = vunpack.c.h.b16 %v409
    %v449 = vunpack.c.l.b16 %v410
    %v450 = vunpack.c.h.b16 %v410
    %v451 = vunpack.c.l.b16 %v411
    %v452 = vunpack.c.h.b16 %v411
    %v453 = vunpack.c.l.b16 %v412
    %v454 = vunpack.c.h.b16 %v412
    %v455 = vunpack.c.l.b16 %v413
    %v456 = vunpack.c.h.b16 %v413
    %v457 = vunpack.c.l.b16 %v414
    %v458 = vunpack.c.h.b16 %v414
    %v459 = vunpack.c.l.b16 %v415
    %v460 = vunpack.c.h.b16 %v415
    %v461 = vunpack.c.l.b16 %v416
    %v462 = vunpack.c.h.b16 %v416
    %v463 = vunpack.c.l.b16 %v417
    %v464 = vunpack.c.h.b16 %v417
    %v465 = vunpack.c.l.b16 %v418
    %v466 = vunpack.c.h.b16 %v418
    %v467 = vpack.c.b16 %v437, %v435
    %v468 = vpack.c.b16 %v438, %v436
    %v469 = vpack.c.b16 %v441, %v439
    %v470 = vpack.c.b16 %v442, %v440
    %v471 = vpack.c.b16 %v445, %v443
    %v472 = vpack.c.b16 %v446, %v444
    %v473 = vpack.c.b16 %v449, %v447
    %v474 = vpack.c.b16 %v450, %v448
    %v475 = vpack.c.b16 %v453, %v451
    %v476 = vpack.c.b16 %v454, %v452
    %v477 = vpack.c.b16 %v457, %v455
    %v478 = vpack.c.b16 %v458, %v456
    %v479 = vpack.c.b16 %v461, %v459
    %v480 = vpack.c.b16 %v462, %v460
    %v481 = vpack.c.b16 %v465, %v463
    %v482 = vpack.c.b16 %v466, %v464
    %499 = vmatprep.subr.bf16.mxu0 %v482
    %500 = vmatpush1.bf16.msra.mxu0 %v481
    %501 = vmatprep.subr.bf16.mxu0 %v480
    %502 = vmatpush1.bf16.msra.mxu0 %v479
    %503 = vmatprep.subr.bf16.mxu0 %v478
    %504 = vmatpush1.bf16.msra.mxu0 %v477
    %505 = vmatprep.subr.bf16.mxu0 %v476
    %506 = vmatpush1.bf16.msra.mxu0 %v475
    %507 = vmatprep.subr.bf16.mxu0 %v474
    %508 = vmatpush1.bf16.msra.mxu0 %v473
    %509 = vmatprep.subr.bf16.mxu0 %v472
    %510 = vmatpush1.bf16.msra.mxu0 %v471
    %511 = vmatprep.subr.bf16.mxu0 %v470
    %512 = vmatpush1.bf16.msra.mxu0 %v469
    %513 = vmatprep.subr.bf16.mxu0 %v468
    %514 = vmatpush1.bf16.msra.mxu0 %v467
    %515 = vmatprep.subr.bf16.mxu0 0
    %516 = vmatpush2.bf16.msra.mxu0 0
    %517 = vmatprep.subr.bf16.mxu0 0
    %518 = vmatpush2.bf16.msra.mxu0 0
    %519 = vmatprep.subr.bf16.mxu0 0
    %520 = vmatpush2.bf16.msra.mxu0 0
    %521 = vmatprep.subr.bf16.mxu0 0
    %522 = vmatpush2.bf16.msra.mxu0 0
    %523 = vmatprep.subr.bf16.mxu0 0
    %524 = vmatpush2.bf16.msra.mxu0 0
    %525 = vmatprep.subr.bf16.mxu0 0
    %526 = vmatpush2.bf16.msra.mxu0 0
    %527 = vmatprep.subr.bf16.mxu0 0
    %528 = vmatpush2.bf16.msra.mxu0 0
    %529 = vmatprep.subr.bf16.mxu0 0
    %530 = vmatpush2.bf16.msra.mxu0 0
    %531 = vmatprep.mubr.bf16.mxu0 0
    %532 = vmatmul.mubr.bf16.gmra.mxu0 %v401
    %v533 = vpop.f32.mrf.mxu0
    %v534 = vadd.f32 0.0, %v533
    %v535 = vpop.f32.mrf.mxu0
    %v536 = vadd.f32 0.0, %v535
    %v537 = vpop.f32.mrf.mxu0
    %v538 = vpop.f32.mrf.mxu0
    %539 = vdwg.mxu0
    %v540 = vmax.f32 %v534, 0.0
    %v541 = vmax.f32 %v536, 0.0
    %v542 = vpack.c.bf16 %v540, %v540
    %v543 = vpack.c.bf16 %v541, %v541
    %v546 = vunpack.c.l.b16 %v542
    %v547 = vunpack.c.l.b16 %v543
    %v548 = vpack.c.b16 %v547, %v546
    %550 = vst [vmem:[#allocation14 + $0x8] sm:$0xff] %v548
    %v551 = vld [vmem:[#allocation10] sm:$0xf]
    %v552 = vld [vmem:[#allocation10 + $0x4] sm:$0xf]
    %v553 = vld [vmem:[#allocation10 + $0x8] sm:$0xf]
    %v554 = vld [vmem:[#allocation10 + $0xc] sm:$0xf]
    %v555 = vld [vmem:[#allocation10 + $0x10] sm:$0xf]
    %v556 = vld [vmem:[#allocation10 + $0x14] sm:$0xf]
    %v557 = vld [vmem:[#allocation10 + $0x18] sm:$0xf]
    %v558 = vld [vmem:[#allocation10 + $0x1c] sm:$0xf]
    %v559 = vld [vmem:[#allocation10 + $0x20] sm:$0xf]
    %v560 = vld [vmem:[#allocation10 + $0x24] sm:$0xf]
    %v561 = vld [vmem:[#allocation10 + $0x28] sm:$0xf]
    %v562 = vld [vmem:[#allocation10 + $0x2c] sm:$0xf]
    %v563 = vld [vmem:[#allocation10 + $0x30] sm:$0xf]
    %v564 = vld [vmem:[#allocation10 + $0x34] sm:$0xf]
    %v565 = vld [vmem:[#allocation10 + $0x38] sm:$0xf]
    %v566 = vld [vmem:[#allocation10 + $0x3c] sm:$0xf]
    %v567 = vld [vmem:[#allocation10 + $0x40] sm:$0xf]
    %v568 = vld [vmem:[#allocation10 + $0x44] sm:$0xf]
    %v569 = vld [vmem:[#allocation10 + $0x48] sm:$0xf]
    %v570 = vld [vmem:[#allocation10 + $0x4c] sm:$0xf]
    %v571 = vld [vmem:[#allocation10 + $0x50] sm:$0xf]
    %v572 = vld [vmem:[#allocation10 + $0x54] sm:$0xf]
    %v573 = vld [vmem:[#allocation10 + $0x58] sm:$0xf]
    %v574 = vld [vmem:[#allocation10 + $0x5c] sm:$0xf]
    %v575 = vld [vmem:[#allocation10 + $0x60] sm:$0xf]
    %v576 = vld [vmem:[#allocation10 + $0x64] sm:$0xf]
    %v577 = vld [vmem:[#allocation10 + $0x68] sm:$0xf]
    %v578 = vld [vmem:[#allocation10 + $0x6c] sm:$0xf]
    %v579 = vld [vmem:[#allocation10 + $0x70] sm:$0xf]
    %v580 = vld [vmem:[#allocation10 + $0x74] sm:$0xf]
    %v581 = vld [vmem:[#allocation10 + $0x78] sm:$0xf]
    %v582 = vld [vmem:[#allocation10 + $0x7c] sm:$0xf]
    %v615 = vunpack.c.l.b16 %v551
    %v616 = vunpack.c.l.b16 %v552
    %v617 = vunpack.c.l.b16 %v553
    %v618 = vunpack.c.l.b16 %v554
    %v619 = vunpack.c.l.b16 %v555
    %v620 = vunpack.c.l.b16 %v556
    %v621 = vunpack.c.l.b16 %v557
    %v622 = vunpack.c.l.b16 %v558
    %v623 = vunpack.c.l.b16 %v559
    %v624 = vunpack.c.l.b16 %v560
    %v625 = vunpack.c.l.b16 %v561
    %v626 = vunpack.c.l.b16 %v562
    %v627 = vunpack.c.l.b16 %v563
    %v628 = vunpack.c.l.b16 %v564
    %v629 = vunpack.c.l.b16 %v565
    %v630 = vunpack.c.l.b16 %v566
    %v631 = vunpack.c.l.b16 %v567
    %v632 = vunpack.c.l.b16 %v568
    %v633 = vunpack.c.l.b16 %v569
    %v634 = vunpack.c.l.b16 %v570
    %v635 = vunpack.c.l.b16 %v571
    %v636 = vunpack.c.l.b16 %v572
    %v637 = vunpack.c.l.b16 %v573
    %v638 = vunpack.c.l.b16 %v574
    %v639 = vunpack.c.l.b16 %v575
    %v640 = vunpack.c.l.b16 %v576
    %v641 = vunpack.c.l.b16 %v577
    %v642 = vunpack.c.l.b16 %v578
    %v643 = vunpack.c.l.b16 %v579
    %v644 = vunpack.c.l.b16 %v580
    %v645 = vunpack.c.l.b16 %v581
    %v646 = vunpack.c.l.b16 %v582
    %v647 = vpack.c.b16 %v616, %v615
    %v648 = vpack.c.b16 %v618, %v617
    %v649 = vpack.c.b16 %v620, %v619
    %v650 = vpack.c.b16 %v622, %v621
    %v651 = vpack.c.b16 %v624, %v623
    %v652 = vpack.c.b16 %v626, %v625
    %v653 = vpack.c.b16 %v628, %v627
    %v654 = vpack.c.b16 %v630, %v629
    %v655 = vpack.c.b16 %v632, %v631
    %v656 = vpack.c.b16 %v634, %v633
    %v657 = vpack.c.b16 %v636, %v635
    %v658 = vpack.c.b16 %v638, %v637
    %v659 = vpack.c.b16 %v640, %v639
    %v660 = vpack.c.b16 %v642, %v641
    %v661 = vpack.c.b16 %v644, %v643
    %v662 = vpack.c.b16 %v646, %v645
    %679 = vmatprep.subr.bf16.mxu0 0
    %680 = vmatpush1.bf16.msra.mxu0 %v654
    %681 = vmatprep.subr.bf16.mxu0 0
    %682 = vmatpush1.bf16.msra.mxu0 %v653
    %683 = vmatprep.subr.bf16.mxu0 0
    %684 = vmatpush1.bf16.msra.mxu0 %v652
    %685 = vmatprep.subr.bf16.mxu0 0
    %686 = vmatpush1.bf16.msra.mxu0 %v651
    %687 = vmatprep.subr.bf16.mxu0 0
    %688 = vmatpush1.bf16.msra.mxu0 %v650
    %689 = vmatprep.subr.bf16.mxu0 0
    %690 = vmatpush1.bf16.msra.mxu0 %v649
    %691 = vmatprep.subr.bf16.mxu0 0
    %692 = vmatpush1.bf16.msra.mxu0 %v648
    %693 = vmatprep.subr.bf16.mxu0 0
    %694 = vmatpush1.bf16.msra.mxu0 %v647
    %695 = vmatprep.subr.bf16.mxu0 0
    %696 = vmatpush2.bf16.msra.mxu0 %v662
    %697 = vmatprep.subr.bf16.mxu0 0
    %698 = vmatpush2.bf16.msra.mxu0 %v661
    %699 = vmatprep.subr.bf16.mxu0 0
    %700 = vmatpush2.bf16.msra.mxu0 %v660
    %701 = vmatprep.subr.bf16.mxu0 0
    %702 = vmatpush2.bf16.msra.mxu0 %v659
    %703 = vmatprep.subr.bf16.mxu0 0
    %704 = vmatpush2.bf16.msra.mxu0 %v658
    %705 = vmatprep.subr.bf16.mxu0 0
    %706 = vmatpush2.bf16.msra.mxu0 %v657
    %707 = vmatprep.subr.bf16.mxu0 0
    %708 = vmatpush2.bf16.msra.mxu0 %v656
    %709 = vmatprep.subr.bf16.mxu0 0
    %710 = vmatpush2.bf16.msra.mxu0 %v655
    %711 = vmatprep.mubr.bf16.mxu0 %v543
    %712 = vmatmul.mubr.bf16.gmra.mxu0 %v542
    %v713 = vpop.f32.mrf.mxu0
    %v714 = vadd.f32 0.0, %v713
    %v715 = vpop.f32.mrf.mxu0
    %v716 = vpop.f32.mrf.mxu0
    %v717 = vpop.f32.mrf.mxu0
    %718 = vdwg.mxu0
    %v719 = vmax.f32 %v714, 0.0
    %v720 = vpack.c.bf16 %v719, %v719
    %721 = vst [vmem:[#allocation14 + $0x10] sm:$0xf] %v720
    %v722 = vld [vmem:[#allocation11] sm:$0xf]
    %v723 = vld [vmem:[#allocation11 + $0x4] sm:$0xf]
    %v724 = vld [vmem:[#allocation11 + $0x8] sm:$0xf]
    %v725 = vld [vmem:[#allocation11 + $0xc] sm:$0xf]
    %v726 = vld [vmem:[#allocation11 + $0x10] sm:$0xf]
    %v727 = vld [vmem:[#allocation11 + $0x14] sm:$0xf]
    %v728 = vld [vmem:[#allocation11 + $0x18] sm:$0xf]
    %v729 = vld [vmem:[#allocation11 + $0x1c] sm:$0xf]
    %v730 = vld [vmem:[#allocation11 + $0x20] sm:$0xf]
    %v731 = vld [vmem:[#allocation11 + $0x24] sm:$0xf]
    %v732 = vld [vmem:[#allocation11 + $0x28] sm:$0xf]
    %v733 = vld [vmem:[#allocation11 + $0x2c] sm:$0xf]
    %v734 = vld [vmem:[#allocation11 + $0x30] sm:$0xf]
    %v735 = vld [vmem:[#allocation11 + $0x34] sm:$0xf]
    %v736 = vld [vmem:[#allocation11 + $0x38] sm:$0xf]
    %v737 = vld [vmem:[#allocation11 + $0x3c] sm:$0xf]
    %v754 = vunpack.c.l.b16 %v722
    %v755 = vunpack.c.l.b16 %v723
    %v756 = vunpack.c.l.b16 %v724
    %v757 = vunpack.c.l.b16 %v725
    %v758 = vunpack.c.l.b16 %v726
    %v759 = vunpack.c.l.b16 %v727
    %v760 = vunpack.c.l.b16 %v728
    %v761 = vunpack.c.l.b16 %v729
    %v762 = vunpack.c.l.b16 %v730
    %v763 = vunpack.c.l.b16 %v731
    %v764 = vunpack.c.l.b16 %v732
    %v765 = vunpack.c.l.b16 %v733
    %v766 = vunpack.c.l.b16 %v734
    %v767 = vunpack.c.l.b16 %v735
    %v768 = vunpack.c.l.b16 %v736
    %v769 = vunpack.c.l.b16 %v737
    %v770 = vpack.c.b16 %v755, %v754
    %v771 = vpack.c.b16 %v757, %v756
    %v772 = vpack.c.b16 %v759, %v758
    %v773 = vpack.c.b16 %v761, %v760
    %v774 = vpack.c.b16 %v763, %v762
    %v775 = vpack.c.b16 %v765, %v764
    %v776 = vpack.c.b16 %v767, %v766
    %v777 = vpack.c.b16 %v769, %v768
    %786 = vmatprep.subr.bf16.mxu0 0
    %787 = vmatpush1.bf16.msra.mxu0 %v777
    %788 = vmatprep.subr.bf16.mxu0 0
    %789 = vmatpush1.bf16.msra.mxu0 %v776
    %790 = vmatprep.subr.bf16.mxu0 0
    %791 = vmatpush1.bf16.msra.mxu0 %v775
    %792 = vmatprep.subr.bf16.mxu0 0
    %793 = vmatpush1.bf16.msra.mxu0 %v774
    %794 = vmatprep.subr.bf16.mxu0 0
    %795 = vmatpush1.bf16.msra.mxu0 %v773
    %796 = vmatprep.subr.bf16.mxu0 0
    %797 = vmatpush1.bf16.msra.mxu0 %v772
    %798 = vmatprep.subr.bf16.mxu0 0
    %799 = vmatpush1.bf16.msra.mxu0 %v771
    %800 = vmatprep.subr.bf16.mxu0 0
    %801 = vmatpush1.bf16.msra.mxu0 %v770
    %802 = vmatprep.subr.bf16.mxu0 0
    %803 = vmatpush2.bf16.msra.mxu0 0
    %804 = vmatprep.subr.bf16.mxu0 0
    %805 = vmatpush2.bf16.msra.mxu0 0
    %806 = vmatprep.subr.bf16.mxu0 0
    %807 = vmatpush2.bf16.msra.mxu0 0
    %808 = vmatprep.subr.bf16.mxu0 0
    %809 = vmatpush2.bf16.msra.mxu0 0
    %810 = vmatprep.subr.bf16.mxu0 0
    %811 = vmatpush2.bf16.msra.mxu0 0
    %812 = vmatprep.subr.bf16.mxu0 0
    %813 = vmatpush2.bf16.msra.mxu0 0
    %814 = vmatprep.subr.bf16.mxu0 0
    %815 = vmatpush2.bf16.msra.mxu0 0
    %816 = vmatprep.subr.bf16.mxu0 0
    %817 = vmatpush2.bf16.msra.mxu0 0
    %818 = vmatprep.mubr.bf16.mxu0 0
    %819 = vmatmul.mubr.bf16.gmra.mxu0 %v720
    %v820 = vpop.f32.mrf.mxu0
    %v821 = vadd.f32 0.0, %v820
    %v822 = vpop.f32.mrf.mxu0
    %v823 = vpop.f32.mrf.mxu0
    %v824 = vpop.f32.mrf.mxu0
    %825 = vdwg.mxu0
    %v826 = vmax.f32 %v821, 0.0
    %v827 = vpack.c.bf16 %v826, %v826
    %828 = vst [vmem:[#allocation14 + $0x14] sm:$0xf] %v827
    %v829 = vld [vmem:[#allocation13] sm:$0xf]
    %v830 = vld [vmem:[#allocation13 + $0x4] sm:$0xf]
    %v831 = vld [vmem:[#allocation13 + $0x8] sm:$0xf]
    %v832 = vld [vmem:[#allocation13 + $0xc] sm:$0xf]
    %v833 = vld [vmem:[#allocation13 + $0x10] sm:$0xf]
    %v834 = vld [vmem:[#allocation13 + $0x14] sm:$0xf]
    %v835 = vld [vmem:[#allocation13 + $0x18] sm:$0xf]
    %v836 = vld [vmem:[#allocation13 + $0x1c] sm:$0xf]
    %v837 = vld [vmem:[#allocation13 + $0x20] sm:$0xf]
    %v838 = vld [vmem:[#allocation13 + $0x24] sm:$0xf]
    %v839 = vld [vmem:[#allocation13 + $0x28] sm:$0xf]
    %v840 = vld [vmem:[#allocation13 + $0x2c] sm:$0xf]
    %v841 = vld [vmem:[#allocation13 + $0x30] sm:$0xf]
    %v842 = vld [vmem:[#allocation13 + $0x34] sm:$0xf]
    %v843 = vld [vmem:[#allocation13 + $0x38] sm:$0xf]
    %v844 = vld [vmem:[#allocation13 + $0x3c] sm:$0xf]
    %v861 = vunpack.c.l.b16 %v829
    %v862 = vunpack.c.l.b16 %v830
    %v863 = vunpack.c.l.b16 %v831
    %v864 = vunpack.c.l.b16 %v832
    %v865 = vunpack.c.l.b16 %v833
    %v866 = vunpack.c.l.b16 %v834
    %v867 = vunpack.c.l.b16 %v835
    %v868 = vunpack.c.l.b16 %v836
    %v869 = vunpack.c.l.b16 %v837
    %v870 = vunpack.c.l.b16 %v838
    %v871 = vunpack.c.l.b16 %v839
    %v872 = vunpack.c.l.b16 %v840
    %v873 = vunpack.c.l.b16 %v841
    %v874 = vunpack.c.l.b16 %v842
    %v875 = vunpack.c.l.b16 %v843
    %v876 = vunpack.c.l.b16 %v844
    %v877 = vpack.c.b16 %v862, %v861
    %v878 = vpack.c.b16 %v864, %v863
    %v879 = vpack.c.b16 %v866, %v865
    %v880 = vpack.c.b16 %v868, %v867
    %v881 = vpack.c.b16 %v870, %v869
    %v882 = vpack.c.b16 %v872, %v871
    %v883 = vpack.c.b16 %v874, %v873
    %v884 = vpack.c.b16 %v876, %v875
    %893 = vmatprep.subr.bf16.mxu0 0
    %894 = vmatpush1.bf16.msra.mxu0 %v884
    %895 = vmatprep.subr.bf16.mxu0 0
    %896 = vmatpush1.bf16.msra.mxu0 %v883
    %897 = vmatprep.subr.bf16.mxu0 0
    %898 = vmatpush1.bf16.msra.mxu0 %v882
    %899 = vmatprep.subr.bf16.mxu0 0
    %900 = vmatpush1.bf16.msra.mxu0 %v881
    %901 = vmatprep.subr.bf16.mxu0 0
    %902 = vmatpush1.bf16.msra.mxu0 %v880
    %903 = vmatprep.subr.bf16.mxu0 0
    %904 = vmatpush1.bf16.msra.mxu0 %v879
    %905 = vmatprep.subr.bf16.mxu0 0
    %906 = vmatpush1.bf16.msra.mxu0 %v878
    %907 = vmatprep.subr.bf16.mxu0 0
    %908 = vmatpush1.bf16.msra.mxu0 %v877
    %909 = vmatprep.subr.bf16.mxu0 0
    %910 = vmatpush2.bf16.msra.mxu0 0
    %911 = vmatprep.subr.bf16.mxu0 0
    %912 = vmatpush2.bf16.msra.mxu0 0
    %913 = vmatprep.subr.bf16.mxu0 0
    %914 = vmatpush2.bf16.msra.mxu0 0
    %915 = vmatprep.subr.bf16.mxu0 0
    %916 = vmatpush2.bf16.msra.mxu0 0
    %917 = vmatprep.subr.bf16.mxu0 0
    %918 = vmatpush2.bf16.msra.mxu0 0
    %919 = vmatprep.subr.bf16.mxu0 0
    %920 = vmatpush2.bf16.msra.mxu0 0
    %921 = vmatprep.subr.bf16.mxu0 0
    %922 = vmatpush2.bf16.msra.mxu0 0
    %923 = vmatprep.subr.bf16.mxu0 0
    %924 = vmatpush2.bf16.msra.mxu0 0
    %925 = vmatprep.mubr.bf16.mxu0 0
    %926 = vmatmul.mubr.bf16.gmra.mxu0 %v827
    %v927 = vpop.f32.mrf.mxu0
    %v928 = vadd.f32 0.0, %v927
    %v929 = vpop.f32.mrf.mxu0
    %v930 = vpop.f32.mrf.mxu0
    %v931 = vpop.f32.mrf.mxu0
    %932 = vdwg.mxu0
    %v933 = vpack.c.bf16 %v928, %v928
    %934 = vst [vmem:[#allocation14 + $0x18] sm:$0xf] %v933
    // Predicated region
    $region58: #{tpu_custom_call.1} parent=1 // pred_check
      _
    $region59: #{tpu_custom_call.1} parent=1 // pred_check_branch
      %936 = sbr.rel (0) target = $region61
    $region60: #{tpu_custom_call.1} parent=1 // pred_region
      %s938 = ssub.s32 448, 448
      %939 = vsyncadd [#allocation4], %s938
      %s941 = sshll.u32 [#allocation14], 4
      %s942 = int_to_ptr.vmem [resolvable:$true] %s941
      %944 = dma.vmem_to_hbm [thread:$0]  %s942, 448, %s7, [#allocation4]
    $region61: #{tpu_custom_call.1} parent=1 // pred_fallthru
      _
    // Predicated region
    $region62: #{tpu_custom_call.1} parent=1 // pred_check
      _
    $region63: #{tpu_custom_call.1} parent=1 // pred_check_branch
      %946 = sbr.rel (0) target = $region65
    $region64: #{tpu_custom_call.1} parent=1 // pred_region
      %947 = dma.done [#allocation4], 448
    $region65: #{tpu_custom_call.1} parent=1 // pred_fallthru
      _
    %948 = vsyncpa [#allocation3], 1
    %949 = vsyncpa [#allocation6], 1
    %950 = vsyncpa [#allocation9], 1
    %951 = vsyncpa [#allocation12], 1
    %952 = vsyncpa [#allocation4], 1

</llo_original>
